<compile_context>
chip_gen: v7x
topology: tpu7x:2x2x1
jax: 0.10.0
libtpu: 0.0.40
codegen_flags: <defaults>
</compile_context>

<pallas_src>
import numpy as np
import jax
import jax.numpy as jnp
from jax.experimental import pallas as pl
from jax.experimental.pallas import tpu as pltpu

# ---- synthetic "config" (config.data / config.model.gen_model) ----
SAMPLE_RATE = 16000
N_FFT = 128
WIN_LENGTH = 128
HOP_LENGTH = 64
N_MELS = 32
# torchaudio MelSpectrogram defaults: power=2.0, center=True, pad_mode="reflect",
# window=hann(periodic=True), mel_scale="htk", norm=None, f_min=0, f_max=sr/2.

N_FREQS = N_FFT // 2 + 1


def _round_up(x, m):
    return ((x + m - 1) // m) * m


FREQ_PAD = _round_up(N_FREQS, 128)   # 65 -> 128 lane-dense frequency columns
MEL_PAD = _round_up(N_MELS, 128)     # 32 -> 128 lane-dense output columns


def _hz_to_mel(f):
    return 2595.0 * np.log10(1.0 + f / 700.0)


def _mel_to_hz(m):
    return 700.0 * (10.0 ** (m / 2595.0) - 1.0)


def melscale_fbanks(n_freqs, f_min, f_max, n_mels, sample_rate):
    # torchaudio.functional.melscale_fbanks (htk scale, norm=None)
    all_freqs = np.linspace(0.0, sample_rate / 2.0, n_freqs)
    m_pts = np.linspace(_hz_to_mel(f_min), _hz_to_mel(f_max), n_mels + 2)
    f_pts = _mel_to_hz(m_pts)
    f_diff = f_pts[1:] - f_pts[:-1]                    # (n_mels + 1,)
    slopes = f_pts[None, :] - all_freqs[:, None]       # (n_freqs, n_mels + 2)
    down = (-1.0 * slopes[:, :-2]) / f_diff[:-1]
    up = slopes[:, 2:] / f_diff[1:]
    fb = np.maximum(0.0, np.minimum(down, up))
    return fb.astype(np.float32)                       # (n_freqs, n_mels)


def build_weights():
    """Window-folded, lane-padded DFT matrix and mel filterbank (host-side numpy)."""
    hann = 0.5 - 0.5 * np.cos(2.0 * np.pi * np.arange(WIN_LENGTH) / WIN_LENGTH)  # periodic
    win = np.zeros((N_FFT,), np.float64)
    off = (N_FFT - WIN_LENGTH) // 2
    win[off:off + WIN_LENGTH] = hann                   # window centered within n_fft

    n = np.arange(N_FFT)[:, None].astype(np.float64)
    k = np.arange(N_FREQS)[None, :].astype(np.float64)
    ang = 2.0 * np.pi * n * k / N_FFT
    cos_w = win[:, None] * np.cos(ang)                 # window folded into DFT: x@(diag(w)C)
    sin_w = win[:, None] * (-np.sin(ang))              # sign irrelevant for |X|^2

    w_fused = np.zeros((N_FFT, 2 * FREQ_PAD), np.float32)
    w_fused[:, :N_FREQS] = cos_w
    w_fused[:, FREQ_PAD:FREQ_PAD + N_FREQS] = sin_w    # [cos | sin], each half padded to 128

    fb = melscale_fbanks(N_FREQS, 0.0, SAMPLE_RATE / 2.0, N_MELS, SAMPLE_RATE)
    fb_pad = np.zeros((FREQ_PAD, MEL_PAD), np.float32)
    fb_pad[:N_FREQS, :N_MELS] = fb                     # zero rows match padded freq lanes
    return w_fused, fb_pad


def mel_kernel(cur_ref, nxt_ref, w_ref, fb_ref, out_ref):
    # cur_ref: (tile_r, HOP)   hop rows of this tile
    # nxt_ref: (8, HOP)        first 8-row block of the next tile (clamped at the end)
    # w_ref:   (N_FFT, 2*FREQ_PAD) window-folded [cos | sin] DFT matrix
    # fb_ref:  (FREQ_PAD, MEL_PAD) zero-padded mel filterbank
    # out_ref: (tile_r, MEL_PAD)
    tile_r = cur_ref.shape[0]
    cur = cur_ref[...]                                              # (tile_r, HOP)
    buf = jnp.concatenate([cur, nxt_ref[...]], axis=0)              # (tile_r + 8, HOP)
    hi = buf[1:tile_r + 1]                                          # sublane shift by 1 row
    frames = jnp.concatenate([cur, hi], axis=1)                     # (tile_r, N_FFT)

    s = jnp.dot(frames, w_ref[...],
                preferred_element_type=jnp.float32)                 # MXU: (tile_r, 2*FREQ_PAD)
    sq = s * s
    power = sq[:, :FREQ_PAD] + sq[:, FREQ_PAD:]                     # |STFT|^2, lane-aligned
    out_ref[...] = jnp.dot(power, fb_ref[...],
                           preferred_element_type=jnp.float32)      # MXU: mel filterbank


def mel_module_forward(wav):
    """wav: (B, 1, T) float32 -> (B, n_frames, n_mels) float32."""
    B, C, T = wav.shape
    assert C == 1, "MelModule squeezes the singleton channel dim"
    assert N_FFT == 2 * HOP_LENGTH, "in-kernel framing assumes n_fft == 2 * hop_length"
    pad = N_FFT // 2

    # --- XLA glue: center reflect-pad, then a *free* reshape into hop rows ---
    x = jnp.pad(wav[:, 0, :].astype(jnp.float32), ((0, 0), (pad, pad)), mode="reflect")
    t_pad = T + 2 * pad
    n_frames = 1 + (t_pad - N_FFT) // HOP_LENGTH
    n_hops = n_frames + 1                              # frame f = [hop f | hop f+1]
    needed = n_hops * HOP_LENGTH
    assert needed <= t_pad
    hf = x[:, :needed].reshape(B * n_hops, HOP_LENGTH)  # (rows, HOP), batches concatenated

    r_total = B * n_hops
    # Row tile: multiple of 8 sublanes, capped at 512, and split so the grid has >=2
    # steps whenever possible (keeps both v7x TensorCores busy even for small inputs).
    tile_r = min(512, _round_up(pl.cdiv(r_total, 2), 8))
    n_tiles = pl.cdiv(r_total, tile_r)
    r_pad = n_tiles * tile_r
    hf = jnp.pad(hf, ((0, r_pad - r_total), (0, 0)))

    w_fused, fb_pad = build_weights()
    w_fused = jnp.asarray(w_fused)
    fb_pad = jnp.asarray(fb_pad)

    blk_per_tile = tile_r // 8
    last_blk = r_pad // 8 - 1                          # clamp for the final tile

    out_full = pl.pallas_call(
        mel_kernel,
        out_shape=jax.ShapeDtypeStruct((r_pad, MEL_PAD), jnp.float32),
        grid_spec=pl.GridSpec(
            grid=(n_tiles,),
            in_specs=[
                # current tile of hop rows
                pl.BlockSpec((tile_r, HOP_LENGTH), lambda t: (t, 0)),
                # first 8-row block of the *next* tile (overlap row for the last frame)
                pl.BlockSpec((8, HOP_LENGTH),
                             lambda t: (jnp.minimum((t + 1) * blk_per_tile, last_blk), 0)),
                # constant weights: same block every step -> DMA'd once, VMEM-resident
                pl.BlockSpec((N_FFT, 2 * FREQ_PAD), lambda t: (0, 0)),
                pl.BlockSpec((FREQ_PAD, MEL_PAD), lambda t: (0, 0)),
            ],
            out_specs=pl.BlockSpec((tile_r, MEL_PAD), lambda t: (t, 0)),
        ),
        compiler_params=pltpu.CompilerParams(dimension_semantics=("parallel",)),
    )(hf, hf, w_fused, fb_pad)

    # Drop zero-padded mel lanes, per-batch seam rows (hop index n_frames) and pad rows.
    out = out_full[:r_total].reshape(B, n_hops, MEL_PAD)[:, :n_frames, :N_MELS]
    return out


def mel_reference(wav):
    """Pure-JAX reference mirroring the original (unfused, unpadded) math."""
    B, C, T = wav.shape
    pad = N_FFT // 2
    x = jnp.pad(wav[:, 0, :].astype(jnp.float32), ((0, 0), (pad, pad)), mode="reflect")
    n_frames = 1 + (x.shape[-1] - N_FFT) // HOP_LENGTH
    idx = (np.arange(n_frames) * HOP_LENGTH)[:, None] + np.arange(N_FFT)[None, :]
    frames = x[:, idx]
    hann = 0.5 - 0.5 * np.cos(2.0 * np.pi * np.arange(WIN_LENGTH) / WIN_LENGTH)
    win = np.zeros((N_FFT,), np.float32)
    off = (N_FFT - WIN_LENGTH) // 2
    win[off:off + WIN_LENGTH] = hann
    n = np.arange(N_FFT)[:, None].astype(np.float64)
    k = np.arange(N_FREQS)[None, :].astype(np.float64)
    ang = 2.0 * np.pi * n * k / N_FFT
    cos_m = np.cos(ang).astype(np.float32)
    sin_m = (-np.sin(ang)).astype(np.float32)
    fb = melscale_fbanks(N_FREQS, 0.0, SAMPLE_RATE / 2.0, N_MELS, SAMPLE_RATE)
    f = frames * win[None, None, :]
    re = jnp.einsum("bfn,nk->bfk", f, cos_m)
    im = jnp.einsum("bfn,nk->bfk", f, sin_m)
    power = re * re + im * im
    return jnp.einsum("bfk,km->bfm", power, fb)


if __name__ == "__main__":
    key = jax.random.PRNGKey(0)
    B, T = 2, 1024
    wav = jax.random.normal(key, (B, 1, T), dtype=jnp.float32)  # (batch, channel=1, samples)

    out = mel_module_forward(wav)
    out = jax.block_until_ready(out)

    expected_frames = 1 + T // HOP_LENGTH
    assert out.shape == (B, expected_frames, N_MELS), out.shape
    ref = jax.block_until_ready(mel_reference(wav))
    np.testing.assert_allclose(np.asarray(out), np.asarray(ref), rtol=3e-4, atol=3e-4)
    assert np.isfinite(np.asarray(out)).all()

    print("KERNEL_OK")
</pallas_src>

<mosaic_0001>
module attributes {stable_mosaic.version = 11 : i64} {
  func.func @mel_kernel(%arg0: i32, %arg1: memref<24x64xf32, #tpu.memory_space<vmem>>, %arg2: memref<8x64xf32, #tpu.memory_space<vmem>>, %arg3: memref<128x256xf32, #tpu.memory_space<vmem>>, %arg4: memref<128x128xf32, #tpu.memory_space<vmem>>, %arg5: memref<24x128xf32, #tpu.memory_space<vmem>>) attributes {dimension_semantics = [#tpu.dimension_semantics<parallel>], iteration_bounds = array<i64: 2>, scalar_prefetch = 0 : i64, scratch_operands = 0 : i64, tpu.core_type = #tpu.core_type<tc>, window_params = [{transform_indices = @transform_0, window_bounds = array<i64: 24, 64>}, {transform_indices = @transform_1, window_bounds = array<i64: 8, 64>}, {pipeline_mode = #tpu.pipeline_mode<synchronous>, transform_indices = @transform_2, window_bounds = array<i64: 128, 256>}, {pipeline_mode = #tpu.pipeline_mode<synchronous>, transform_indices = @transform_3, window_bounds = array<i64: 128, 128>}, {transform_indices = @transform_4, window_bounds = array<i64: 24, 128>}]} {
    %c0 = arith.constant 0 : index
    %c0_0 = arith.constant 0 : index
    %0 = vector.load %arg1[%c0, %c0_0] : memref<24x64xf32, #tpu.memory_space<vmem>>, vector<24x64xf32>
    %c0_1 = arith.constant 0 : index
    %c0_2 = arith.constant 0 : index
    %1 = vector.load %arg2[%c0_1, %c0_2] : memref<8x64xf32, #tpu.memory_space<vmem>>, vector<8x64xf32>
    %2 = tpu.concatenate %0, %1 in 0 : vector<24x64xf32>, vector<8x64xf32> -> vector<32x64xf32>
    %3 = vector.extract_strided_slice %2 {offsets = [1, 0], sizes = [24, 64], strides = [1, 1]} : vector<32x64xf32> to vector<24x64xf32>
    %4 = tpu.concatenate %0, %3 in 1 : vector<24x64xf32>, vector<24x64xf32> -> vector<24x128xf32>
    %c0_3 = arith.constant 0 : index
    %c0_4 = arith.constant 0 : index
    %5 = vector.load %arg3[%c0_3, %c0_4] : memref<128x256xf32, #tpu.memory_space<vmem>>, vector<128x256xf32>
    %cst = arith.constant dense<0.000000e+00> : vector<24x256xf32>
    %6 = tpu.matmul %4, %5, %cst {dimension_numbers = #tpu.dot_dimension_numbers<[1], [0], [0], [1], [0, 0, 1, 1], [], []>} : vector<24x128xf32>, vector<128x256xf32>, vector<24x256xf32> -> vector<24x256xf32>
    %7 = arith.mulf %6, %6 : vector<24x256xf32>
    %8 = vector.extract_strided_slice %7 {offsets = [0, 0], sizes = [24, 128], strides = [1, 1]} : vector<24x256xf32> to vector<24x128xf32>
    %9 = vector.extract_strided_slice %7 {offsets = [0, 128], sizes = [24, 128], strides = [1, 1]} : vector<24x256xf32> to vector<24x128xf32>
    %10 = arith.addf %8, %9 : vector<24x128xf32>
    %c0_5 = arith.constant 0 : index
    %c0_6 = arith.constant 0 : index
    %11 = vector.load %arg4[%c0_5, %c0_6] : memref<128x128xf32, #tpu.memory_space<vmem>>, vector<128x128xf32>
    %cst_7 = arith.constant dense<0.000000e+00> : vector<24x128xf32>
    %12 = tpu.matmul %10, %11, %cst_7 {dimension_numbers = #tpu.dot_dimension_numbers<[1], [0], [0], [1], [0, 0, 1, 1], [], []>} : vector<24x128xf32>, vector<128x128xf32>, vector<24x128xf32> -> vector<24x128xf32>
    %c0_8 = arith.constant 0 : index
    %c0_9 = arith.constant 0 : index
    %13 = vector.load %arg5[%c0_8, %c0_9] : memref<24x128xf32, #tpu.memory_space<vmem>>, vector<24x128xf32>
    tpu.vector_store %arg5[%c0_8, %c0_9], %12 {strides = array<i32>} : memref<24x128xf32, #tpu.memory_space<vmem>>, vector<24x128xf32>,
    return
  }
  func.func @transform_0(%arg0: i32) -> (i32, i32) {
    %c0_i32 = arith.constant 0 : i32
    %c0_i32_0 = arith.constant 0 : i32
    return %arg0, %c0_i32 : i32, i32
  }
  func.func @transform_1(%arg0: i32) -> (i32, i32) {
    %c1_i32 = arith.constant 1 : i32
    %0 = arith.addi %arg0, %c1_i32 : i32
    %c3_i32 = arith.constant 3 : i32
    %1 = arith.muli %0, %c3_i32 : i32
    %c5_i32 = arith.constant 5 : i32
    %2 = arith.minsi %1, %c5_i32 : i32
    %c0_i32 = arith.constant 0 : i32
    %c0_i32_0 = arith.constant 0 : i32
    return %2, %c0_i32 : i32, i32
  }
  func.func @transform_2(%arg0: i32) -> (i32, i32) {
    %c0_i32 = arith.constant 0 : i32
    %c0_i32_0 = arith.constant 0 : i32
    %c0_i32_1 = arith.constant 0 : i32
    return %c0_i32, %c0_i32_0 : i32, i32
  }
  func.func @transform_3(%arg0: i32) -> (i32, i32) {
    %c0_i32 = arith.constant 0 : i32
    %c0_i32_0 = arith.constant 0 : i32
    %c0_i32_1 = arith.constant 0 : i32
    return %c0_i32, %c0_i32_0 : i32, i32
  }
  func.func @transform_4(%arg0: i32) -> (i32, i32) {
    %c0_i32 = arith.constant 0 : i32
    %c0_i32_0 = arith.constant 0 : i32
    return %arg0, %c0_i32 : i32, i32
  }
}

</mosaic_0001>

<llo_original>
// kernel: tpu_custom_call.1
$region0: #{tpu_custom_call.1}
  #allocation0 [shape = 'u32[]', space=smem, size = 0x4, offset = 0x4, fixed_abs, tag = 'smem constant byte address 0x4 - core index']
  #allocation1 [shape = 'u32[144,128]{1,0:T(1,128)}', space=vmem, size = 0x12000, scoped, tag = 'internal scratch']
  %s0 = inlined_call_operand.hbm [shape: f32[48,64], index: 0, kind: input, shape index: {}]
  %s1 = inlined_call_operand.hbm [shape: f32[48,64], index: 1, kind: input, shape index: {}]
  %s2 = inlined_call_operand.hbm [shape: f32[128,256], index: 2, kind: input, shape index: {}]
  %s3 = inlined_call_operand.hbm [shape: f32[128,128], index: 3, kind: input, shape index: {}]
  %s4 = inlined_call_operand.hbm [shape: f32[48,128], index: 4, kind: output, shape index: {}]
  %s5 = sld [smem:[#allocation0]]
  $region65: #{tpu_custom_call.1} parent=0
    _
  %s7 = ssub.s32 1, %s5
  %s8 = scalar_select 0, %s7, %s5
  $region1: #{tpu_custom_call.1} parent=0
    #allocation2 [shape = 'u8[24576]{0}', space=vmem, size = 0x6000, scoped, tag = 'input window, operand 0']
    #allocation3 [shape = 's32[2]{0}', space=sflag, size = 0x8, scoped, tag = 'scoped memory for tpu_custom_call.1']
    #allocation4 [shape = 's32[2]{0}', space=sflag, size = 0x8, scoped, tag = 'scoped memory for tpu_custom_call.1']
    #allocation5 [shape = 'u8[8192]{0}', space=vmem, size = 0x2000, scoped, tag = 'input window, operand 1']
    #allocation6 [shape = 's32[2]{0}', space=sflag, size = 0x8, scoped, tag = 'scoped memory for tpu_custom_call.1']
    #allocation7 [shape = 'u8[131072]{0}', space=vmem, size = 0x20000, scoped, tag = 'input window, operand 2, single buffered']
    #allocation8 [shape = 'u8[65536]{0}', space=vmem, size = 0x10000, scoped, tag = 'input window, operand 3, single buffered']
    #allocation9 [shape = 's32[1]{0}', space=sflag, size = 0x4, scoped, tag = 'scoped memory for tpu_custom_call.1']
    #allocation10 [shape = 'u8[24576]{0}', space=vmem, size = 0x6000, scoped, tag = 'output window, operand 0']
    %9 = vsyncpa [#allocation3], 0
    %s10 = scalar_lea.sflag [#allocation3], 1
    %11 = vsyncpa %s10, 0
    %12 = vsyncpa [#allocation6], 0
    %s13 = scalar_lea.sflag [#allocation6], 1
    %14 = vsyncpa %s13, 0
    %15 = vsyncpa [#allocation9], 0
    %16 = vsyncpa [#allocation4], 0
    %s17 = scalar_lea.sflag [#allocation4], 1
    %18 = vsyncpa %s17, 0
    loop: start=0, step=1, limit=4
    $region2: #{tpu_custom_call.1} parent=1 // loop_pre_header
      _
    $region3: #{tpu_custom_call.1} parent=1 // loop_header
      %s20 = sphi 0, %s24
      %p21 = scmp.ge.s32.totalorder %s20, 4
      %s30 = sphi 0, %s32
      %s33 = sphi 0, %s30
      %s34 = sphi 0, %s33
      %s50 = sphi 0, %s34
      %s64 = sphi 0, %s66
      %s67 = sphi 0, %s64
      %s68 = sphi 0, %s67
      %s84 = sphi 0, %s68
      %s88 = sphi 0, %s88
      %s90 = sphi 0, %s88
      %s91 = sphi 0, %s90
      %s105 = sphi 0, %s91
      %s109 = sphi 0, %s109
      %s111 = sphi 0, %s109
      %s112 = sphi 0, %s111
      %s126 = sphi 0, %s112
      %s132 = sphi 0, %s134
      %s135 = sphi 0, %s132
      %s136 = sphi 0, %s135
      %s152 = sphi 0, %s136
    $region4: #{tpu_custom_call.1} parent=1 // loop_header_branch
      %23 = sbr.rel (%p21) target = $region8
    $region5: #{tpu_custom_call.1} parent=1 // loop_body
      %s25 = ssub.s32 %s20, 1
      %s26 = ssub.s32 %s20, 2
      %s27 = sadd.s32 %s20, 1
      %s28 = ssub.s32 %s20, %s27
      %p29 = scmp.eq.s32.totalorder %s28, 0
      %s31 = sadd.s32 %s30, 1
      %s32 = scalar_select %p29, %s30, %s31
      %p35 = pneg %p29
      %p36 = scmp.eq.s32.totalorder %s20, 1
      %p37 = por %p35, %p36
      %p38 = scmp.ne.s32.totalorder %s30, %s33
      %p39 = scmp.eq.s32.totalorder %s20, 0
      %p40 = por %p38, %p39
      %p41 = scmp.ne.s32.totalorder %s30, %s33
      %p42 = scmp.eq.s32.totalorder %s25, 1
      %p43 = por %p41, %p42
      %p44 = scmp.ne.s32.totalorder %s33, %s34
      %p45 = scmp.eq.s32.totalorder %s25, 0
      %p46 = por %p44, %p45
      %p47 = scmp.ne.s32.totalorder %s33, %s34
      %p48 = scmp.eq.s32.totalorder %s26, 1
      %p49 = por %p47, %p48
      %p51 = scmp.ne.s32.totalorder %s34, %s50
      %p52 = scmp.eq.s32.totalorder %s26, 0
      %p53 = por %p51, %p52
      %s54 = sadd.s32 %s20, 1
      %s55 = smul.u32 %s54, 3
      %p56 = scmp.lt.s32.totalorder %s55, 5
      %s57 = scalar_select %p56, %s55, 5
      %s58 = sadd.s32 %s27, 1
      %s59 = smul.u32 %s58, 3
      %p60 = scmp.lt.s32.totalorder %s59, 5
      %s61 = scalar_select %p60, %s59, 5
      %s62 = ssub.s32 %s57, %s61
      %p63 = scmp.eq.s32.totalorder %s62, 0
      %s65 = sadd.s32 %s64, 1
      %s66 = scalar_select %p63, %s64, %s65
      %p69 = pneg %p63
      %p70 = scmp.eq.s32.totalorder %s20, 1
      %p71 = por %p69, %p70
      %p72 = scmp.ne.s32.totalorder %s64, %s67
      %p73 = scmp.eq.s32.totalorder %s20, 0
      %p74 = por %p72, %p73
      %p75 = scmp.ne.s32.totalorder %s64, %s67
      %p76 = scmp.eq.s32.totalorder %s25, 1
      %p77 = por %p75, %p76
      %p78 = scmp.ne.s32.totalorder %s67, %s68
      %p79 = scmp.eq.s32.totalorder %s25, 0
      %p80 = por %p78, %p79
      %p81 = scmp.ne.s32.totalorder %s67, %s68
      %p82 = scmp.eq.s32.totalorder %s26, 1
      %p83 = por %p81, %p82
      %p85 = scmp.ne.s32.totalorder %s68, %s84
      %p86 = scmp.eq.s32.totalorder %s26, 0
      %p87 = por %p85, %p86
      %s89 = sadd.s32 %s88, 1
      %p92 = scmp.eq.s32.totalorder %s20, 1
      %p93 = scmp.ne.s32.totalorder %s88, %s90
      %p94 = scmp.eq.s32.totalorder %s20, 0
      %p95 = por %p93, %p94
      %p96 = scmp.ne.s32.totalorder %s88, %s90
      %p97 = scmp.eq.s32.totalorder %s25, 1
      %p98 = por %p96, %p97
      %p99 = scmp.ne.s32.totalorder %s90, %s91
      %p100 = scmp.eq.s32.totalorder %s25, 0
      %p101 = por %p99, %p100
      %p102 = scmp.ne.s32.totalorder %s90, %s91
      %p103 = scmp.eq.s32.totalorder %s26, 1
      %p104 = por %p102, %p103
      %p106 = scmp.ne.s32.totalorder %s91, %s105
      %p107 = scmp.eq.s32.totalorder %s26, 0
      %p108 = por %p106, %p107
      %s110 = sadd.s32 %s109, 1
      %p113 = scmp.eq.s32.totalorder %s20, 1
      %p114 = scmp.ne.s32.totalorder %s109, %s111
      %p115 = scmp.eq.s32.totalorder %s20, 0
      %p116 = por %p114, %p115
      %p117 = scmp.ne.s32.totalorder %s109, %s111
      %p118 = scmp.eq.s32.totalorder %s25, 1
      %p119 = por %p117, %p118
      %p120 = scmp.ne.s32.totalorder %s111, %s112
      %p121 = scmp.eq.s32.totalorder %s25, 0
      %p122 = por %p120, %p121
      %p123 = scmp.ne.s32.totalorder %s111, %s112
      %p124 = scmp.eq.s32.totalorder %s26, 1
      %p125 = por %p123, %p124
      %p127 = scmp.ne.s32.totalorder %s112, %s126
      %p128 = scmp.eq.s32.totalorder %s26, 0
      %p129 = por %p127, %p128
      %s130 = ssub.s32 %s20, %s27
      %p131 = scmp.eq.s32.totalorder %s130, 0
      %s133 = sadd.s32 %s132, 1
      %s134 = scalar_select %p131, %s132, %s133
      %p137 = pneg %p131
      %p138 = scmp.eq.s32.totalorder %s20, 1
      %p139 = por %p137, %p138
      %p140 = scmp.ne.s32.totalorder %s132, %s135
      %p141 = scmp.eq.s32.totalorder %s20, 0
      %p142 = por %p140, %p141
      %p143 = scmp.ne.s32.totalorder %s132, %s135
      %p144 = scmp.eq.s32.totalorder %s25, 1
      %p145 = por %p143, %p144
      %p146 = scmp.ne.s32.totalorder %s135, %s136
      %p147 = scmp.eq.s32.totalorder %s25, 0
      %p148 = por %p146, %p147
      %p149 = scmp.ne.s32.totalorder %s135, %s136
      %p150 = scmp.eq.s32.totalorder %s26, 1
      %p151 = por %p149, %p150
      %p153 = scmp.ne.s32.totalorder %s136, %s152
      %p154 = scmp.eq.s32.totalorder %s26, 0
      %p155 = por %p153, %p154
      %p156 = scmp.le.s32.totalorder 1, %s20
      %p157 = scmp.lt.s32.totalorder %s20, 3
      %p158 = pnand %p156, %p157
      %p159 = pneg %p158
      // Predicated region
      $region9: #{tpu_custom_call.1} parent=5 // pred_check
        _
      $region10: #{tpu_custom_call.1} parent=5 // pred_check_branch
        %161 = sbr.rel (%p158) target = $region12
      $region11: #{tpu_custom_call.1} parent=5 // pred_region
        %s162 = ssub.s32 %s20, 1
        // Predicated region
        $region13: #{tpu_custom_call.1} parent=11 // pred_check
          %p163 = pneg %p101
        $region14: #{tpu_custom_call.1} parent=11 // pred_check_branch
          %165 = sbr.rel (%p163) target = $region16
        $region15: #{tpu_custom_call.1} parent=11 // pred_region
          %s167 = ssub.s32 4096, 4096
          %168 = vsyncadd [#allocation6], %s167
          %s169 = sshll.u32 [#allocation7], 4
          %s170 = int_to_ptr.vmem [resolvable:$true] %s169
          %175 = dma.hbm_to_vmem [thread:$0]  %s2, 4096, %s170, [#allocation6], 256, 256, 16
        $region16: #{tpu_custom_call.1} parent=11 // pred_fallthru
          _
        // Predicated region
        $region17: #{tpu_custom_call.1} parent=11 // pred_check
          %p176 = pneg %p122
        $region18: #{tpu_custom_call.1} parent=11 // pred_check_branch
          %178 = sbr.rel (%p176) target = $region20
        $region19: #{tpu_custom_call.1} parent=11 // pred_region
          %s180 = ssub.s32 2048, 2048
          %181 = vsyncadd [#allocation9], %s180
          %s182 = sshll.u32 [#allocation8], 4
          %s183 = int_to_ptr.vmem [resolvable:$true] %s182
          %188 = dma.hbm_to_vmem [thread:$0]  %s3, 2048, %s183, [#allocation9], 128, 128, 8
        $region20: #{tpu_custom_call.1} parent=11 // pred_fallthru
          _
      $region12: #{tpu_custom_call.1} parent=5 // pred_fallthru
        _
      %p189 = scmp.lt.s32.totalorder %s20, 2
      // Predicated region
      $region21: #{tpu_custom_call.1} parent=5 // pred_check
        %p190 = pneg %p189
      $region22: #{tpu_custom_call.1} parent=5 // pred_check_branch
        %192 = sbr.rel (%p190) target = $region24
      $region23: #{tpu_custom_call.1} parent=5 // pred_region
        // Predicated region
        $region25: #{tpu_custom_call.1} parent=23 // pred_check
          %p193 = pneg %p40
        $region26: #{tpu_custom_call.1} parent=23 // pred_check_branch
          %195 = sbr.rel (%p193) target = $region28
        $region27: #{tpu_custom_call.1} parent=23 // pred_region
          %s196 = sand.u32 %s30, 1
          %s197 = scalar_lea.sflag [#allocation3], %s196
          %s198 = sand.u32 %s30, 1
          %s199 = smul.addr %s198, 24
          %s200 = scalar_lea.vmem [#allocation2], %s199
          %s201 = smul.u32 3, %s20
          %s203 = ssub.s32 384, 384
          %204 = vsyncadd %s197, %s203
          %s205 = smul.addr %s201, 128
          %s206 = scalar_lea.hbm %s0, %s205
          %s207 = sshll.u32 %s200, 4
          %s208 = int_to_ptr.vmem [resolvable:$true] %s207
          %213 = dma.hbm_to_vmem [thread:$0]  %s206, 384, %s208, %s197, 128, 128, 8
        $region28: #{tpu_custom_call.1} parent=23 // pred_fallthru
          _
        // Predicated region
        $region29: #{tpu_custom_call.1} parent=23 // pred_check
          %p214 = pneg %p74
        $region30: #{tpu_custom_call.1} parent=23 // pred_check_branch
          %216 = sbr.rel (%p214) target = $region32
        $region31: #{tpu_custom_call.1} parent=23 // pred_region
          %s217 = sand.u32 %s20, 1
          %s218 = scalar_lea.sflag [#allocation6], %s217
          %s219 = sand.u32 %s64, 1
          %s220 = smul.addr %s219, 8
          %s221 = scalar_lea.vmem [#allocation5], %s220
          %s222 = sadd.s32 %s20, 1
          %s223 = smul.u32 %s222, 3
          %p224 = scmp.lt.s32.totalorder %s223, 5
          %s225 = scalar_select %p224, %s223, 5
          %s227 = ssub.s32 128, 128
          %228 = vsyncadd %s218, %s227
          %s229 = smul.addr %s225, 128
          %s230 = scalar_lea.hbm %s1, %s229
          %s232 = sshll.u32 %s221, 4
          %s233 = int_to_ptr.vmem [resolvable:$true] %s232
          %235 = dma.hbm_to_vmem [thread:$0]  %s230, 128, %s233, %s218
        $region32: #{tpu_custom_call.1} parent=23 // pred_fallthru
          _
      $region24: #{tpu_custom_call.1} parent=5 // pred_fallthru
        _
      %p236 = scmp.le.s32.totalorder 1, %s20
      %p237 = scmp.lt.s32.totalorder %s20, 3
      %p238 = pnand %p236, %p237
      %p239 = pneg %p238
      // Predicated region
      $region33: #{tpu_custom_call.1} parent=5 // pred_check
        _
      $region34: #{tpu_custom_call.1} parent=5 // pred_check_branch
        %241 = sbr.rel (%p238) target = $region36
      $region35: #{tpu_custom_call.1} parent=5 // pred_region
        %s242 = ssub.s32 %s20, 1
        %s243 = sand.u32 %s33, 1
        %s244 = scalar_lea.sflag [#allocation3], %s243
        %s245 = sand.u32 %s33, 1
        %s246 = smul.addr %s245, 24
        %s247 = scalar_lea.vmem [#allocation2], %s246
        // Predicated region
        $region37: #{tpu_custom_call.1} parent=35 // pred_check
          %p248 = pneg %p46
        $region38: #{tpu_custom_call.1} parent=35 // pred_check_branch
          %250 = sbr.rel (%p248) target = $region40
        $region39: #{tpu_custom_call.1} parent=35 // pred_region
          %251 = dma.done %s244, 384
        $region40: #{tpu_custom_call.1} parent=35 // pred_fallthru
          _
        %s252 = sand.u32 %s25, 1
        %s253 = scalar_lea.sflag [#allocation6], %s252
        %s254 = sand.u32 %s67, 1
        %s255 = smul.addr %s254, 8
        %s256 = scalar_lea.vmem [#allocation5], %s255
        // Predicated region
        $region41: #{tpu_custom_call.1} parent=35 // pred_check
          %p257 = pneg %p80
        $region42: #{tpu_custom_call.1} parent=35 // pred_check_branch
          %259 = sbr.rel (%p257) target = $region44
        $region43: #{tpu_custom_call.1} parent=35 // pred_region
          %260 = dma.done %s253, 128
        $region44: #{tpu_custom_call.1} parent=35 // pred_fallthru
          _
        // Predicated region
        $region45: #{tpu_custom_call.1} parent=35 // pred_check
          %p261 = pneg %p101
        $region46: #{tpu_custom_call.1} parent=35 // pred_check_branch
          %263 = sbr.rel (%p261) target = $region48
        $region47: #{tpu_custom_call.1} parent=35 // pred_region
          %264 = dma.done [#allocation6], 4096
        $region48: #{tpu_custom_call.1} parent=35 // pred_fallthru
          _
        // Predicated region
        $region49: #{tpu_custom_call.1} parent=35 // pred_check
          %p265 = pneg %p122
        $region50: #{tpu_custom_call.1} parent=35 // pred_check_branch
          %267 = sbr.rel (%p265) target = $region52
        $region51: #{tpu_custom_call.1} parent=35 // pred_region
          %268 = dma.done [#allocation9], 2048
        $region52: #{tpu_custom_call.1} parent=35 // pred_fallthru
          _
        %s269 = sand.u32 %s33, 1
        %s270 = scalar_lea.sflag [#allocation3], %s269
        %s271 = sand.u32 %s33, 1
        %s272 = smul.addr %s271, 24
        %s273 = scalar_lea.vmem [#allocation2], %s272
        %p274 = pneg %p46
        %p275 = pneg %p43
        %s276 = sand.u32 %s25, 1
        %s277 = scalar_lea.sflag [#allocation6], %s276
        %s278 = sand.u32 %s67, 1
        %s279 = smul.addr %s278, 8
        %s280 = scalar_lea.vmem [#allocation5], %s279
        %p281 = pneg %p80
        %p282 = pneg %p77
        %p283 = pneg %p101
        %p284 = pneg %p98
        %p285 = pneg %p122
        %p286 = pneg %p119
        %p287 = pneg %p148
        %p288 = pneg %p145
        %s289 = sand.u32 %s135, 1
        %s290 = scalar_lea.sflag [#allocation4], %s289
        %s291 = sand.u32 %s135, 1
        %s292 = smul.addr %s291, 24
        %s293 = scalar_lea.vmem [#allocation10], %s292
        %s294 = smul.u32 3, %s25
        %s295 = sadd.s32 %s25, 1
        %s296 = smul.u32 %s295, 3
        %p297 = scmp.lt.s32.totalorder %s296, 5
        %s298 = scalar_select %p297, %s296, 5
        %s299 = smul.u32 3, %s25
        %v300 = vld [vmem:[%s247] sm:$0xff]
        %v301 = vld [vmem:[%s247 + $0x8] sm:$0xff]
        %v302 = vld [vmem:[%s247 + $0x10] sm:$0xff]
        %v303 = vld [vmem:[%s256] sm:$0xff]
        %vm308 = vcmask 1046528
        %v309 = vrot.slane %v300, 1
        %v310 = vrot.slane %v301, 1
        %v311 = vsel %vm308, %v309, %v310
        %v312 = vrot.slane %v302, 1
        %v313 = vsel %vm308, %v310, %v312
        %v314 = vrot.slane %v303, 1
        %v315 = vsel %vm308, %v312, %v314
        %316 = vrot.lane.b32.xlu0 %v311, 64
        %v317 = vpop.permute.xlu0 %316
        %318 = vrot.lane.b32.xlu0 %v313, 64
        %v319 = vpop.permute.xlu0 %318
        %320 = vrot.lane.b32.xlu0 %v315, 64
        %v321 = vpop.permute.xlu0 %320
        %vm325 = vcmask 523264
        %v326 = vsel %vm325, %v300, %v317
        %v327 = vsel %vm325, %v301, %v319
        %v328 = vsel %vm325, %v302, %v321
        %v329 = vld [vmem:[#allocation7] sm:$0xff]
        %v330 = vld [vmem:[#allocation7 + $0x8] sm:$0xff]
        %v331 = vld [vmem:[#allocation7 + $0x10] sm:$0xff]
        %v332 = vld [vmem:[#allocation7 + $0x18] sm:$0xff]
        %v333 = vld [vmem:[#allocation7 + $0x20] sm:$0xff]
        %v334 = vld [vmem:[#allocation7 + $0x28] sm:$0xff]
        %v335 = vld [vmem:[#allocation7 + $0x30] sm:$0xff]
        %v336 = vld [vmem:[#allocation7 + $0x38] sm:$0xff]
        %v337 = vld [vmem:[#allocation7 + $0x40] sm:$0xff]
        %v338 = vld [vmem:[#allocation7 + $0x48] sm:$0xff]
        %v339 = vld [vmem:[#allocation7 + $0x50] sm:$0xff]
        %v340 = vld [vmem:[#allocation7 + $0x58] sm:$0xff]
        %v341 = vld [vmem:[#allocation7 + $0x60] sm:$0xff]
        %v342 = vld [vmem:[#allocation7 + $0x68] sm:$0xff]
        %v343 = vld [vmem:[#allocation7 + $0x70] sm:$0xff]
        %v344 = vld [vmem:[#allocation7 + $0x78] sm:$0xff]
        %v345 = vld [vmem:[#allocation7 + $0x80] sm:$0xff]
        %v346 = vld [vmem:[#allocation7 + $0x88] sm:$0xff]
        %v347 = vld [vmem:[#allocation7 + $0x90] sm:$0xff]
        %v348 = vld [vmem:[#allocation7 + $0x98] sm:$0xff]
        %v349 = vld [vmem:[#allocation7 + $0xa0] sm:$0xff]
        %v350 = vld [vmem:[#allocation7 + $0xa8] sm:$0xff]
        %v351 = vld [vmem:[#allocation7 + $0xb0] sm:$0xff]
        %v352 = vld [vmem:[#allocation7 + $0xb8] sm:$0xff]
        %v353 = vld [vmem:[#allocation7 + $0xc0] sm:$0xff]
        %v354 = vld [vmem:[#allocation7 + $0xc8] sm:$0xff]
        %v355 = vld [vmem:[#allocation7 + $0xd0] sm:$0xff]
        %v356 = vld [vmem:[#allocation7 + $0xd8] sm:$0xff]
        %v357 = vld [vmem:[#allocation7 + $0xe0] sm:$0xff]
        %v358 = vld [vmem:[#allocation7 + $0xe8] sm:$0xff]
        %v359 = vld [vmem:[#allocation7 + $0xf0] sm:$0xff]
        %v360 = vld [vmem:[#allocation7 + $0xf8] sm:$0xff]
        %361 = vmatprep.subr.mxu0 %v330
        %362 = vmatpush1.msra.mxu0 %v329
        %363 = vmatprep.subr.mxu0 %v332
        %364 = vmatpush1.msra.mxu0 %v331
        %365 = vmatprep.subr.mxu0 %v334
        %366 = vmatpush1.msra.mxu0 %v333
        %367 = vmatprep.subr.mxu0 %v336
        %368 = vmatpush1.msra.mxu0 %v335
        %369 = vmatprep.subr.mxu0 %v338
        %370 = vmatpush1.msra.mxu0 %v337
        %371 = vmatprep.subr.mxu0 %v340
        %372 = vmatpush1.msra.mxu0 %v339
        %373 = vmatprep.subr.mxu0 %v342
        %374 = vmatpush1.msra.mxu0 %v341
        %375 = vmatprep.subr.mxu0 %v344
        %376 = vmatpush1.msra.mxu0 %v343
        %377 = vmatprep.subr.mxu0 %v346
        %378 = vmatpush1.msra.mxu0 %v345
        %379 = vmatprep.subr.mxu0 %v348
        %380 = vmatpush1.msra.mxu0 %v347
        %381 = vmatprep.subr.mxu0 %v350
        %382 = vmatpush1.msra.mxu0 %v349
        %383 = vmatprep.subr.mxu0 %v352
        %384 = vmatpush1.msra.mxu0 %v351
        %385 = vmatprep.subr.mxu0 %v354
        %386 = vmatpush1.msra.mxu0 %v353
        %387 = vmatprep.subr.mxu0 %v356
        %388 = vmatpush1.msra.mxu0 %v355
        %389 = vmatprep.subr.mxu0 %v358
        %390 = vmatpush1.msra.mxu0 %v357
        %391 = vmatprep.subr.mxu0 %v360
        %392 = vmatpush1.msra.mxu0 %v359
        %393 = vmatprep.subr.mxu0 0.0
        %394 = vmatpush1.msra.mxu0 0.0
        %395 = vmatprep.subr.mxu0 0.0
        %396 = vmatpush1.msra.mxu0 0.0
        %397 = vmatprep.subr.mxu0 0.0
        %398 = vmatpush1.msra.mxu0 0.0
        %399 = vmatprep.subr.mxu0 0.0
        %400 = vmatpush1.msra.mxu0 0.0
        %401 = vmatprep.subr.mxu0 0.0
        %402 = vmatpush1.msra.mxu0 0.0
        %403 = vmatprep.subr.mxu0 0.0
        %404 = vmatpush1.msra.mxu0 0.0
        %405 = vmatprep.subr.mxu0 0.0
        %406 = vmatpush1.msra.mxu0 0.0
        %407 = vmatprep.subr.mxu0 0.0
        %408 = vmatpush1.msra.mxu0 0.0
        %409 = vmatprep.subr.mxu0 0.0
        %410 = vmatpush1.msra.mxu0 0.0
        %411 = vmatprep.subr.mxu0 0.0
        %412 = vmatpush1.msra.mxu0 0.0
        %413 = vmatprep.subr.mxu0 0.0
        %414 = vmatpush1.msra.mxu0 0.0
        %415 = vmatprep.subr.mxu0 0.0
        %416 = vmatpush1.msra.mxu0 0.0
        %417 = vmatprep.subr.mxu0 0.0
        %418 = vmatpush1.msra.mxu0 0.0
        %419 = vmatprep.subr.mxu0 0.0
        %420 = vmatpush1.msra.mxu0 0.0
        %421 = vmatprep.subr.mxu0 0.0
        %422 = vmatpush1.msra.mxu0 0.0
        %423 = vmatprep.subr.mxu0 0.0
        %424 = vmatpush1.msra.mxu0 0.0
        %425 = vmatprep.mubr.f32.mxu0 0.0
        %426 = vmatmul.mubr.f32.gmra.mrb[0].mxu0 %v326
        %v427 = vpop.f32.mrb[0].mxu0
        %v428 = vadd.f32 0.0, %v427
        %v429 = vpop.f32.mrb[0].mxu0
        %v430 = vadd.f32 0.0, %v429
        %431 = vmatprep.mubr.f32.mxu0 0.0
        %432 = vmatmul.mubr.f32.gmra.mrb[0].mxu0 %v327
        %v433 = vpop.f32.mrb[0].mxu0
        %v434 = vadd.f32 0.0, %v433
        %v435 = vpop.f32.mrb[0].mxu0
        %v436 = vadd.f32 0.0, %v435
        %437 = vmatprep.mubr.f32.mxu0 0.0
        %438 = vmatmul.mubr.f32.gmra.mrb[0].mxu0 %v328
        %v439 = vpop.f32.mrb[0].mxu0
        %v440 = vadd.f32 0.0, %v439
        %v441 = vpop.f32.mrb[0].mxu0
        %v442 = vadd.f32 0.0, %v441
        %443 = vdwg.mxu0
        %v444 = vmul.f32 %v428, %v428
        %v445 = vmul.f32 %v430, %v430
        %v446 = vmul.f32 %v434, %v434
        %v447 = vmul.f32 %v436, %v436
        %v448 = vmul.f32 %v440, %v440
        %v449 = vmul.f32 %v442, %v442
        %v450 = vadd.f32 %v444, %v445
        %v451 = vadd.f32 %v446, %v447
        %v452 = vadd.f32 %v448, %v449
        %v453 = vld [vmem:[#allocation8] sm:$0xff]
        %v454 = vld [vmem:[#allocation8 + $0x8] sm:$0xff]
        %v455 = vld [vmem:[#allocation8 + $0x10] sm:$0xff]
        %v456 = vld [vmem:[#allocation8 + $0x18] sm:$0xff]
        %v457 = vld [vmem:[#allocation8 + $0x20] sm:$0xff]
        %v458 = vld [vmem:[#allocation8 + $0x28] sm:$0xff]
        %v459 = vld [vmem:[#allocation8 + $0x30] sm:$0xff]
        %v460 = vld [vmem:[#allocation8 + $0x38] sm:$0xff]
        %v461 = vld [vmem:[#allocation8 + $0x40] sm:$0xff]
        %v462 = vld [vmem:[#allocation8 + $0x48] sm:$0xff]
        %v463 = vld [vmem:[#allocation8 + $0x50] sm:$0xff]
        %v464 = vld [vmem:[#allocation8 + $0x58] sm:$0xff]
        %v465 = vld [vmem:[#allocation8 + $0x60] sm:$0xff]
        %v466 = vld [vmem:[#allocation8 + $0x68] sm:$0xff]
        %v467 = vld [vmem:[#allocation8 + $0x70] sm:$0xff]
        %v468 = vld [vmem:[#allocation8 + $0x78] sm:$0xff]
        %469 = vmatprep.subr.mxu0 0.0
        %470 = vmatpush1.msra.mxu0 %v453
        %471 = vmatprep.subr.mxu0 0.0
        %472 = vmatpush1.msra.mxu0 %v454
        %473 = vmatprep.subr.mxu0 0.0
        %474 = vmatpush1.msra.mxu0 %v455
        %475 = vmatprep.subr.mxu0 0.0
        %476 = vmatpush1.msra.mxu0 %v456
        %477 = vmatprep.subr.mxu0 0.0
        %478 = vmatpush1.msra.mxu0 %v457
        %479 = vmatprep.subr.mxu0 0.0
        %480 = vmatpush1.msra.mxu0 %v458
        %481 = vmatprep.subr.mxu0 0.0
        %482 = vmatpush1.msra.mxu0 %v459
        %483 = vmatprep.subr.mxu0 0.0
        %484 = vmatpush1.msra.mxu0 %v460
        %485 = vmatprep.subr.mxu0 0.0
        %486 = vmatpush1.msra.mxu0 %v461
        %487 = vmatprep.subr.mxu0 0.0
        %488 = vmatpush1.msra.mxu0 %v462
        %489 = vmatprep.subr.mxu0 0.0
        %490 = vmatpush1.msra.mxu0 %v463
        %491 = vmatprep.subr.mxu0 0.0
        %492 = vmatpush1.msra.mxu0 %v464
        %493 = vmatprep.subr.mxu0 0.0
        %494 = vmatpush1.msra.mxu0 %v465
        %495 = vmatprep.subr.mxu0 0.0
        %496 = vmatpush1.msra.mxu0 %v466
        %497 = vmatprep.subr.mxu0 0.0
        %498 = vmatpush1.msra.mxu0 %v467
        %499 = vmatprep.subr.mxu0 0.0
        %500 = vmatpush1.msra.mxu0 %v468
        %501 = vmatprep.subr.mxu0 0.0
        %502 = vmatpush1.msra.mxu0 0.0
        %503 = vmatprep.subr.mxu0 0.0
        %504 = vmatpush1.msra.mxu0 0.0
        %505 = vmatprep.subr.mxu0 0.0
        %506 = vmatpush1.msra.mxu0 0.0
        %507 = vmatprep.subr.mxu0 0.0
        %508 = vmatpush1.msra.mxu0 0.0
        %509 = vmatprep.subr.mxu0 0.0
        %510 = vmatpush1.msra.mxu0 0.0
        %511 = vmatprep.subr.mxu0 0.0
        %512 = vmatpush1.msra.mxu0 0.0
        %513 = vmatprep.subr.mxu0 0.0
        %514 = vmatpush1.msra.mxu0 0.0
        %515 = vmatprep.subr.mxu0 0.0
        %516 = vmatpush1.msra.mxu0 0.0
        %517 = vmatprep.subr.mxu0 0.0
        %518 = vmatpush1.msra.mxu0 0.0
        %519 = vmatprep.subr.mxu0 0.0
        %520 = vmatpush1.msra.mxu0 0.0
        %521 = vmatprep.subr.mxu0 0.0
        %522 = vmatpush1.msra.mxu0 0.0
        %523 = vmatprep.subr.mxu0 0.0
        %524 = vmatpush1.msra.mxu0 0.0
        %525 = vmatprep.subr.mxu0 0.0
        %526 = vmatpush1.msra.mxu0 0.0
        %527 = vmatprep.subr.mxu0 0.0
        %528 = vmatpush1.msra.mxu0 0.0
        %529 = vmatprep.subr.mxu0 0.0
        %530 = vmatpush1.msra.mxu0 0.0
        %531 = vmatprep.subr.mxu0 0.0
        %532 = vmatpush1.msra.mxu0 0.0
        %533 = vmatprep.mubr.f32.mxu0 0.0
        %534 = vmatmul.mubr.f32.gmra.mrb[0].mxu0 %v450
        %v535 = vpop.f32.mrb[0].mxu0
        %v536 = vadd.f32 0.0, %v535
        %v537 = vpop.f32.mrb[0].mxu0
        %538 = vmatprep.mubr.f32.mxu0 0.0
        %539 = vmatmul.mubr.f32.gmra.mrb[0].mxu0 %v451
        %v540 = vpop.f32.mrb[0].mxu0
        %v541 = vadd.f32 0.0, %v540
        %v542 = vpop.f32.mrb[0].mxu0
        %543 = vmatprep.mubr.f32.mxu0 0.0
        %544 = vmatmul.mubr.f32.gmra.mrb[0].mxu0 %v452
        %v545 = vpop.f32.mrb[0].mxu0
        %v546 = vadd.f32 0.0, %v545
        %v547 = vpop.f32.mrb[0].mxu0
        %548 = vdwg.mxu0
        %549 = vst [vmem:[%s293] sm:$0xff] %v536
        %550 = vst [vmem:[%s293 + $0x8] sm:$0xff] %v541
        %551 = vst [vmem:[%s293 + $0x10] sm:$0xff] %v546
        %s552 = sand.u32 %s135, 1
        %s553 = scalar_lea.sflag [#allocation4], %s552
        %s554 = sand.u32 %s135, 1
        %s555 = smul.addr %s554, 24
        %s556 = scalar_lea.vmem [#allocation10], %s555
        // Predicated region
        $region53: #{tpu_custom_call.1} parent=35 // pred_check
          %p557 = pneg %p145
        $region54: #{tpu_custom_call.1} parent=35 // pred_check_branch
          %559 = sbr.rel (%p557) target = $region56
        $region55: #{tpu_custom_call.1} parent=35 // pred_region
          %s560 = smul.u32 3, %s25
          %s562 = ssub.s32 384, 384
          %563 = vsyncadd %s553, %s562
          %s564 = smul.addr %s560, 128
          %s565 = scalar_lea.hbm %s4, %s564
          %s566 = sshll.u32 %s556, 4
          %s567 = int_to_ptr.vmem [resolvable:$true] %s566
          %572 = dma.vmem_to_hbm [thread:$0]  %s567, 384, %s565, %s553, 128, 128, 8
        $region56: #{tpu_custom_call.1} parent=35 // pred_fallthru
          _
      $region36: #{tpu_custom_call.1} parent=5 // pred_fallthru
        _
      %p573 = scmp.le.s32.totalorder 2, %s20
      // Predicated region
      $region57: #{tpu_custom_call.1} parent=5 // pred_check
        %p574 = pneg %p573
      $region58: #{tpu_custom_call.1} parent=5 // pred_check_branch
        %576 = sbr.rel (%p574) target = $region60
      $region59: #{tpu_custom_call.1} parent=5 // pred_region
        %s577 = ssub.s32 %s20, 2
        // Predicated region
        $region61: #{tpu_custom_call.1} parent=59 // pred_check
          %p578 = pneg %p151
        $region62: #{tpu_custom_call.1} parent=59 // pred_check_branch
          %580 = sbr.rel (%p578) target = $region64
        $region63: #{tpu_custom_call.1} parent=59 // pred_region
          %s581 = sand.u32 %s136, 1
          %s582 = scalar_lea.sflag [#allocation4], %s581
          %s583 = sand.u32 %s136, 1
          %s584 = smul.addr %s583, 24
          %s585 = scalar_lea.vmem [#allocation10], %s584
          %586 = dma.done %s582, 384
        $region64: #{tpu_custom_call.1} parent=59 // pred_fallthru
          _
      $region60: #{tpu_custom_call.1} parent=5 // pred_fallthru
        _
    $region6: #{tpu_custom_call.1} parent=1 // loop_footer
      %s24 = sadd.s32 1, %s20
    $region7: #{tpu_custom_call.1} parent=1 // loop_footer_branch
      %19 = sbr.rel target = $region3
    $region8: #{tpu_custom_call.1} parent=1 // loop_exit
      _
    %587 = vsyncpa [#allocation3], 1
    %s588 = scalar_lea.sflag [#allocation3], 1
    %589 = vsyncpa %s588, 1
    %590 = vsyncpa [#allocation6], 1
    %s591 = scalar_lea.sflag [#allocation6], 1
    %592 = vsyncpa %s591, 1
    %593 = vsyncpa [#allocation9], 1
    %594 = vsyncpa [#allocation4], 1
    %s595 = scalar_lea.sflag [#allocation4], 1
    %596 = vsyncpa %s595, 1

</llo_original>
